<compile_context>
chip_gen: v5e
topology: v5e:2x2
jax: 0.10.0
libtpu: 0.0.40
codegen_flags: <defaults>
</compile_context>

<pallas_src>
import math
from functools import partial

import jax
import jax.numpy as jnp
from jax.experimental import pallas as pl
from jax.experimental.pallas import tpu as pltpu


LANE = 128
SUBLANE = 8


def _round_up(x, m):
    return ((x + m - 1) // m) * m


# ----------------------------------------------------------------------------
# Pallas kernel: one (C_in, TILE_N) column-block of the fused MLP
# ----------------------------------------------------------------------------
def _final_mlp_kernel(x_ref, w1_ref, b1_ref, w2_ref, b2_ref, w3_ref, b3_ref,
                      o_ref):
    # x_ref : (C_in, TILE_N)   f32 activations (native channel-major layout)
    # w*    : (C_out, C_in)    f32 weights; b*: (C_out, 1) f32 biases
    # o_ref : (OUT_PAD, TILE_N) f32 — OUT_PAD is an 8-sublane pad of out_num
    x = x_ref[...]
    h = jnp.dot(w1_ref[...], x, preferred_element_type=jnp.float32) + b1_ref[...]
    h = jnp.maximum(h, 0.0)
    h = jnp.dot(w2_ref[...], h, preferred_element_type=jnp.float32) + b2_ref[...]
    h = jnp.maximum(h, 0.0)
    o_ref[...] = (jnp.dot(w3_ref[...], h, preferred_element_type=jnp.float32)
                  + b3_ref[...])


# ----------------------------------------------------------------------------
# Wrapper
# ----------------------------------------------------------------------------
def final_mlp_forward(params, x, *, out_num, tile_n=2048):
    """final_mlp forward pass.  x: (B, in_num, N) -> (B, out_num, N)."""
    B, C_in, N = x.shape
    out_pad = params["w3"].shape[0]
    x = x.astype(jnp.float32)

    # Tile along N (the lane axis).  Largest lane-aligned tile <= tile_n.
    tile = min(_round_up(tile_n, LANE), _round_up(N, LANE))
    n_p = _round_up(N, tile)
    if n_p != N:
        # Padded columns produce garbage in padded output columns only;
        # they are sliced off below.
        x = jnp.pad(x, ((0, 0), (0, 0), (0, n_p - N)))

    grid = (B, n_p // tile)
    const2 = lambda b, j: (0, 0)   # weights/biases: resident, DMA'd once

    out = pl.pallas_call(
        _final_mlp_kernel,
        out_shape=jax.ShapeDtypeStruct((B, out_pad, n_p), jnp.float32),
        grid=grid,
        in_specs=[
            pl.BlockSpec((None, C_in, tile), lambda b, j: (b, 0, j)),
            pl.BlockSpec(params["w1"].shape, const2),
            pl.BlockSpec(params["b1"].shape, const2),
            pl.BlockSpec(params["w2"].shape, const2),
            pl.BlockSpec(params["b2"].shape, const2),
            pl.BlockSpec(params["w3"].shape, const2),
            pl.BlockSpec(params["b3"].shape, const2),
        ],
        out_specs=pl.BlockSpec((None, out_pad, tile), lambda b, j: (b, 0, j)),
        compiler_params=pltpu.CompilerParams(
            dimension_semantics=("parallel", "parallel")),
    )(x, params["w1"], params["b1"], params["w2"], params["b2"],
      params["w3"], params["b3"])

    # Drop sublane padding of the output channels and lane padding of N.
    return out[:, :out_num, :N]


def final_mlp_reference(params, x, *, out_num):
    """Plain-JAX reference (for self-check)."""
    x = x.astype(jnp.float32)
    h = jnp.einsum("oi,bin->bon", params["w1"], x) + params["b1"][None]
    h = jnp.maximum(h, 0.0)
    h = jnp.einsum("oi,bin->bon", params["w2"], h) + params["b2"][None]
    h = jnp.maximum(h, 0.0)
    y = jnp.einsum("oi,bin->bon", params["w3"], h) + params["b3"][None]
    return y[:, :out_num, :]


# ----------------------------------------------------------------------------
# Parameter construction (PyTorch Conv1d-style uniform init), f32 weights
# ----------------------------------------------------------------------------
def init_final_mlp_params(key, in_num, out_num):
    def conv1d_init(k, cin, cout):
        kw, kb = jax.random.split(k)
        bound = 1.0 / math.sqrt(cin)          # kernel_size = 1
        w = jax.random.uniform(kw, (cout, cin), jnp.float32, -bound, bound)
        b = jax.random.uniform(kb, (cout, 1), jnp.float32, -bound, bound)
        return w, b

    k1, k2, k3 = jax.random.split(key, 3)
    w1, b1 = conv1d_init(k1, in_num, 256)
    w2, b2 = conv1d_init(k2, 256, 64)
    w3, b3 = conv1d_init(k3, 64, out_num)

    # Zero-pad the last layer's output channels to an 8-sublane multiple only
    # (not 128 lanes): the kernel stores (out_pad, TILE_N) lane-dense blocks.
    out_pad = _round_up(out_num, SUBLANE)
    w3 = jnp.pad(w3, ((0, out_pad - out_num), (0, 0)))
    b3 = jnp.pad(b3, ((0, out_pad - out_num), (0, 0)))

    return dict(w1=w1, b1=b1, w2=w2, b2=b2, w3=w3, b3=b3)


# ----------------------------------------------------------------------------
if __name__ == "__main__":
    key = jax.random.PRNGKey(0)
    k_x, k_p = jax.random.split(key)

    B, IN_NUM, N, OUT_NUM = 2, 32, 16, 3
    x = jax.random.normal(k_x, (B, IN_NUM, N), jnp.float32)
    params = init_final_mlp_params(k_p, IN_NUM, OUT_NUM)

    fwd = jax.jit(partial(final_mlp_forward, out_num=OUT_NUM))
    y = jax.block_until_ready(fwd(params, x))

    assert y.shape == (B, OUT_NUM, N), y.shape
    assert y.dtype == jnp.float32, y.dtype
    assert bool(jnp.all(jnp.isfinite(y)))

    y_ref = final_mlp_reference(params, x, out_num=OUT_NUM)
    max_err = float(jnp.max(jnp.abs(y - y_ref)))
    assert jnp.allclose(y, y_ref, atol=2e-3, rtol=2e-3), max_err

    print("KERNEL_OK")
</pallas_src>

<mosaic_0001>
module attributes {stable_mosaic.version = 11 : i64} {
  func.func @_final_mlp_kernel(%arg0: i32, %arg1: i32, %arg2: memref<1x32x128xf32, #tpu.memory_space<vmem>>, %arg3: memref<256x32xf32, #tpu.memory_space<vmem>>, %arg4: memref<256x1xf32, #tpu.memory_space<vmem>>, %arg5: memref<64x256xf32, #tpu.memory_space<vmem>>, %arg6: memref<64x1xf32, #tpu.memory_space<vmem>>, %arg7: memref<8x64xf32, #tpu.memory_space<vmem>>, %arg8: memref<8x1xf32, #tpu.memory_space<vmem>>, %arg9: memref<1x8x128xf32, #tpu.memory_space<vmem>>) attributes {dimension_semantics = [#tpu.dimension_semantics<parallel>, #tpu.dimension_semantics<parallel>], iteration_bounds = array<i64: 2, 1>, scalar_prefetch = 0 : i64, scratch_operands = 0 : i64, tpu.core_type = #tpu.core_type<tc>, window_params = [{transform_indices = @transform_0, window_bounds = array<i64: 1, 32, 128>}, {pipeline_mode = #tpu.pipeline_mode<synchronous>, transform_indices = @transform_1, window_bounds = array<i64: 256, 32>}, {pipeline_mode = #tpu.pipeline_mode<synchronous>, transform_indices = @transform_2, window_bounds = array<i64: 256, 1>}, {pipeline_mode = #tpu.pipeline_mode<synchronous>, transform_indices = @transform_3, window_bounds = array<i64: 64, 256>}, {pipeline_mode = #tpu.pipeline_mode<synchronous>, transform_indices = @transform_4, window_bounds = array<i64: 64, 1>}, {pipeline_mode = #tpu.pipeline_mode<synchronous>, transform_indices = @transform_5, window_bounds = array<i64: 8, 64>}, {pipeline_mode = #tpu.pipeline_mode<synchronous>, transform_indices = @transform_6, window_bounds = array<i64: 8, 1>}, {transform_indices = @transform_7, window_bounds = array<i64: 1, 8, 128>}]} {
    %c0 = arith.constant 0 : index
    %c0_0 = arith.constant 0 : index
    %c0_1 = arith.constant 0 : index
    %0 = vector.load %arg2[%c0, %c0_0, %c0_1] : memref<1x32x128xf32, #tpu.memory_space<vmem>>, vector<1x32x128xf32>
    %1 = vector.shape_cast %0 : vector<1x32x128xf32> to vector<32x128xf32>
    %c0_2 = arith.constant 0 : index
    %c0_3 = arith.constant 0 : index
    %2 = vector.load %arg3[%c0_2, %c0_3] : memref<256x32xf32, #tpu.memory_space<vmem>>, vector<256x32xf32>
    %cst = arith.constant dense<0.000000e+00> : vector<256x128xf32>
    %3 = tpu.matmul %2, %1, %cst {dimension_numbers = #tpu.dot_dimension_numbers<[1], [0], [0], [1], [0, 0, 1, 1], [], []>} : vector<256x32xf32>, vector<32x128xf32>, vector<256x128xf32> -> vector<256x128xf32>
    %c0_4 = arith.constant 0 : index
    %c0_5 = arith.constant 0 : index
    %4 = vector.load %arg4[%c0_4, %c0_5] : memref<256x1xf32, #tpu.memory_space<vmem>>, vector<256x1xf32>
    %5 = vector.broadcast %4 : vector<256x1xf32> to vector<256x128xf32>
    %6 = arith.addf %3, %5 : vector<256x128xf32>
    %cst_6 = arith.constant 0.000000e+00 : f32
    %7 = vector.broadcast %cst_6 : f32 to vector<256x128xf32>
    %8 = arith.maximumf %6, %7 : vector<256x128xf32>
    %c0_7 = arith.constant 0 : index
    %c0_8 = arith.constant 0 : index
    %9 = vector.load %arg5[%c0_7, %c0_8] : memref<64x256xf32, #tpu.memory_space<vmem>>, vector<64x256xf32>
    %cst_9 = arith.constant dense<0.000000e+00> : vector<64x128xf32>
    %10 = tpu.matmul %9, %8, %cst_9 {dimension_numbers = #tpu.dot_dimension_numbers<[1], [0], [0], [1], [0, 0, 1, 1], [], []>} : vector<64x256xf32>, vector<256x128xf32>, vector<64x128xf32> -> vector<64x128xf32>
    %c0_10 = arith.constant 0 : index
    %c0_11 = arith.constant 0 : index
    %11 = vector.load %arg6[%c0_10, %c0_11] : memref<64x1xf32, #tpu.memory_space<vmem>>, vector<64x1xf32>
    %12 = vector.broadcast %11 : vector<64x1xf32> to vector<64x128xf32>
    %13 = arith.addf %10, %12 : vector<64x128xf32>
    %cst_12 = arith.constant 0.000000e+00 : f32
    %14 = vector.broadcast %cst_12 : f32 to vector<64x128xf32>
    %15 = arith.maximumf %13, %14 : vector<64x128xf32>
    %c0_13 = arith.constant 0 : index
    %c0_14 = arith.constant 0 : index
    %16 = vector.load %arg7[%c0_13, %c0_14] : memref<8x64xf32, #tpu.memory_space<vmem>>, vector<8x64xf32>
    %cst_15 = arith.constant dense<0.000000e+00> : vector<8x128xf32>
    %17 = tpu.matmul %16, %15, %cst_15 {dimension_numbers = #tpu.dot_dimension_numbers<[1], [0], [0], [1], [0, 0, 1, 1], [], []>} : vector<8x64xf32>, vector<64x128xf32>, vector<8x128xf32> -> vector<8x128xf32>
    %c0_16 = arith.constant 0 : index
    %c0_17 = arith.constant 0 : index
    %18 = vector.load %arg8[%c0_16, %c0_17] : memref<8x1xf32, #tpu.memory_space<vmem>>, vector<8x1xf32>
    %19 = vector.broadcast %18 : vector<8x1xf32> to vector<8x128xf32>
    %20 = arith.addf %17, %19 : vector<8x128xf32>
    %c0_18 = arith.constant 0 : index
    %c0_19 = arith.constant 0 : index
    %c0_20 = arith.constant 0 : index
    %21 = vector.load %arg9[%c0_18, %c0_19, %c0_20] : memref<1x8x128xf32, #tpu.memory_space<vmem>>, vector<1x8x128xf32>
    %22 = vector.shape_cast %21 : vector<1x8x128xf32> to vector<8x128xf32>
    %23 = vector.shape_cast %20 : vector<8x128xf32> to vector<1x8x128xf32>
    tpu.vector_store %arg9[%c0_18, %c0_19, %c0_20], %23 {strides = array<i32>} : memref<1x8x128xf32, #tpu.memory_space<vmem>>, vector<1x8x128xf32>,
    return
  }
  func.func @transform_0(%arg0: i32, %arg1: i32) -> (i32, i32, i32) {
    %c0_i32 = arith.constant 0 : i32
    %c0_i32_0 = arith.constant 0 : i32
    return %arg0, %c0_i32, %arg1 : i32, i32, i32
  }
  func.func @transform_1(%arg0: i32, %arg1: i32) -> (i32, i32) {
    %c0_i32 = arith.constant 0 : i32
    %c0_i32_0 = arith.constant 0 : i32
    %c0_i32_1 = arith.constant 0 : i32
    return %c0_i32, %c0_i32_0 : i32, i32
  }
  func.func @transform_2(%arg0: i32, %arg1: i32) -> (i32, i32) {
    %c0_i32 = arith.constant 0 : i32
    %c0_i32_0 = arith.constant 0 : i32
    %c0_i32_1 = arith.constant 0 : i32
    return %c0_i32, %c0_i32_0 : i32, i32
  }
  func.func @transform_3(%arg0: i32, %arg1: i32) -> (i32, i32) {
    %c0_i32 = arith.constant 0 : i32
    %c0_i32_0 = arith.constant 0 : i32
    %c0_i32_1 = arith.constant 0 : i32
    return %c0_i32, %c0_i32_0 : i32, i32
  }
  func.func @transform_4(%arg0: i32, %arg1: i32) -> (i32, i32) {
    %c0_i32 = arith.constant 0 : i32
    %c0_i32_0 = arith.constant 0 : i32
    %c0_i32_1 = arith.constant 0 : i32
    return %c0_i32, %c0_i32_0 : i32, i32
  }
  func.func @transform_5(%arg0: i32, %arg1: i32) -> (i32, i32) {
    %c0_i32 = arith.constant 0 : i32
    %c0_i32_0 = arith.constant 0 : i32
    %c0_i32_1 = arith.constant 0 : i32
    return %c0_i32, %c0_i32_0 : i32, i32
  }
  func.func @transform_6(%arg0: i32, %arg1: i32) -> (i32, i32) {
    %c0_i32 = arith.constant 0 : i32
    %c0_i32_0 = arith.constant 0 : i32
    %c0_i32_1 = arith.constant 0 : i32
    return %c0_i32, %c0_i32_0 : i32, i32
  }
  func.func @transform_7(%arg0: i32, %arg1: i32) -> (i32, i32, i32) {
    %c0_i32 = arith.constant 0 : i32
    %c0_i32_0 = arith.constant 0 : i32
    return %arg0, %c0_i32, %arg1 : i32, i32, i32
  }
}

</mosaic_0001>

<llo_original>
// kernel: final_mlp_forward.1
$region0: #{final_mlp_forward.1}
  #allocation0 [shape = 'u32[]', space=smem, size = 0x4, offset = 0x4, fixed_abs, tag = 'smem constant byte address 0x4 - core index']
  #allocation1 [shape = 'u32[72,128]{1,0:T(1,128)}', space=vmem, size = 0x9000, scoped, tag = 'internal scratch']
  %s0 = inlined_call_operand.vmem [shape: f32[2,32,128], index: 0, kind: input, shape index: {}]
  %s1 = inlined_call_operand.vmem [shape: f32[256,32], index: 1, kind: input, shape index: {}]
  %s2 = inlined_call_operand.vmem [shape: f32[256,1], index: 2, kind: input, shape index: {}]
  %s3 = inlined_call_operand.vmem [shape: f32[64,256], index: 3, kind: input, shape index: {}]
  %s4 = inlined_call_operand.vmem [shape: f32[64,1], index: 4, kind: input, shape index: {}]
  %s5 = inlined_call_operand.vmem [shape: f32[8,64], index: 5, kind: input, shape index: {}]
  %s6 = inlined_call_operand.vmem [shape: f32[8,1], index: 6, kind: input, shape index: {}]
  %s7 = inlined_call_operand.vmem [shape: f32[2,8,128], index: 7, kind: output, shape index: {}]
  %s8 = sld [smem:[#allocation0]]
  $region61: #{final_mlp_forward.1} parent=0
    _
  %s10 = ssub.s32 1, %s8
  %s11 = scalar_select 0, %s10, %s8
  loop: start=0, step=1, limit=4
  $region2: #{final_mlp_forward.1} parent=0 // loop_pre_header
    _
  $region3: #{final_mlp_forward.1} parent=0 // loop_header
    %s13 = sphi 0, %s17
    %p14 = scmp.ge.s32.totalorder %s13, 4
    %s20 = sphi 0, %s32
    %s21 = sphi 0, %s28
    %s22 = sphi 0, %s20
    %s23 = sphi 0, %s21
    %s24 = sphi 0, %s22
    %s25 = sphi 0, %s23
    %s37 = sphi 0, %s39
    %s40 = sphi 0, %s37
    %s41 = sphi 0, %s40
    %s57 = sphi 0, %s41
    %s61 = sphi 0, %s61
    %s63 = sphi 0, %s61
    %s64 = sphi 0, %s63
    %s78 = sphi 0, %s64
    %s82 = sphi 0, %s82
    %s84 = sphi 0, %s82
    %s85 = sphi 0, %s84
    %s99 = sphi 0, %s85
    %s103 = sphi 0, %s103
    %s105 = sphi 0, %s103
    %s106 = sphi 0, %s105
    %s120 = sphi 0, %s106
    %s124 = sphi 0, %s124
    %s126 = sphi 0, %s124
    %s127 = sphi 0, %s126
    %s141 = sphi 0, %s127
    %s145 = sphi 0, %s145
    %s147 = sphi 0, %s145
    %s148 = sphi 0, %s147
    %s162 = sphi 0, %s148
    %s166 = sphi 0, %s166
    %s168 = sphi 0, %s166
    %s169 = sphi 0, %s168
    %s183 = sphi 0, %s169
    %s191 = sphi 0, %s193
    %s194 = sphi 0, %s191
    %s195 = sphi 0, %s194
    %s211 = sphi 0, %s195
  $region4: #{final_mlp_forward.1} parent=0 // loop_header_branch
    %16 = sbr.rel (%p14) target = $region8
  $region5: #{final_mlp_forward.1} parent=0 // loop_body
    %s18 = ssub.s32 %s13, 1
    %s19 = ssub.s32 %s13, 2
    %s26 = sadd.s32 1, %s21
    %p27 = scmp.ge.s32.totalorder %s26, 1
    %s28 = scalar_select %p27, 0, %s26
    %s29 = sadd.s32 1, %s20
    %s30 = scalar_select %p27, %s29, %s20
    %p31 = scmp.ge.s32.totalorder %s30, 2
    %s32 = scalar_select %p31, 0, %s30
    %s33 = ssub.s32 %s20, %s32
    %s34 = ssub.s32 %s21, %s28
    %s35 = sor.u32 %s33, %s34
    %p36 = scmp.eq.s32.totalorder %s35, 0
    %s38 = sadd.s32 %s37, 1
    %s39 = scalar_select %p36, %s37, %s38
    %p42 = pneg %p36
    %p43 = scmp.eq.s32.totalorder %s13, 1
    %p44 = por %p42, %p43
    %p45 = scmp.ne.s32.totalorder %s37, %s40
    %p46 = scmp.eq.s32.totalorder %s13, 0
    %p47 = por %p45, %p46
    %p48 = scmp.ne.s32.totalorder %s37, %s40
    %p49 = scmp.eq.s32.totalorder %s18, 1
    %p50 = por %p48, %p49
    %p51 = scmp.ne.s32.totalorder %s40, %s41
    %p52 = scmp.eq.s32.totalorder %s18, 0
    %p53 = por %p51, %p52
    %p54 = scmp.ne.s32.totalorder %s40, %s41
    %p55 = scmp.eq.s32.totalorder %s19, 1
    %p56 = por %p54, %p55
    %p58 = scmp.ne.s32.totalorder %s41, %s57
    %p59 = scmp.eq.s32.totalorder %s19, 0
    %p60 = por %p58, %p59
    %s62 = sadd.s32 %s61, 1
    %p65 = scmp.eq.s32.totalorder %s13, 1
    %p66 = scmp.ne.s32.totalorder %s61, %s63
    %p67 = scmp.eq.s32.totalorder %s13, 0
    %p68 = por %p66, %p67
    %p69 = scmp.ne.s32.totalorder %s61, %s63
    %p70 = scmp.eq.s32.totalorder %s18, 1
    %p71 = por %p69, %p70
    %p72 = scmp.ne.s32.totalorder %s63, %s64
    %p73 = scmp.eq.s32.totalorder %s18, 0
    %p74 = por %p72, %p73
    %p75 = scmp.ne.s32.totalorder %s63, %s64
    %p76 = scmp.eq.s32.totalorder %s19, 1
    %p77 = por %p75, %p76
    %p79 = scmp.ne.s32.totalorder %s64, %s78
    %p80 = scmp.eq.s32.totalorder %s19, 0
    %p81 = por %p79, %p80
    %s83 = sadd.s32 %s82, 1
    %p86 = scmp.eq.s32.totalorder %s13, 1
    %p87 = scmp.ne.s32.totalorder %s82, %s84
    %p88 = scmp.eq.s32.totalorder %s13, 0
    %p89 = por %p87, %p88
    %p90 = scmp.ne.s32.totalorder %s82, %s84
    %p91 = scmp.eq.s32.totalorder %s18, 1
    %p92 = por %p90, %p91
    %p93 = scmp.ne.s32.totalorder %s84, %s85
    %p94 = scmp.eq.s32.totalorder %s18, 0
    %p95 = por %p93, %p94
    %p96 = scmp.ne.s32.totalorder %s84, %s85
    %p97 = scmp.eq.s32.totalorder %s19, 1
    %p98 = por %p96, %p97
    %p100 = scmp.ne.s32.totalorder %s85, %s99
    %p101 = scmp.eq.s32.totalorder %s19, 0
    %p102 = por %p100, %p101
    %s104 = sadd.s32 %s103, 1
    %p107 = scmp.eq.s32.totalorder %s13, 1
    %p108 = scmp.ne.s32.totalorder %s103, %s105
    %p109 = scmp.eq.s32.totalorder %s13, 0
    %p110 = por %p108, %p109
    %p111 = scmp.ne.s32.totalorder %s103, %s105
    %p112 = scmp.eq.s32.totalorder %s18, 1
    %p113 = por %p111, %p112
    %p114 = scmp.ne.s32.totalorder %s105, %s106
    %p115 = scmp.eq.s32.totalorder %s18, 0
    %p116 = por %p114, %p115
    %p117 = scmp.ne.s32.totalorder %s105, %s106
    %p118 = scmp.eq.s32.totalorder %s19, 1
    %p119 = por %p117, %p118
    %p121 = scmp.ne.s32.totalorder %s106, %s120
    %p122 = scmp.eq.s32.totalorder %s19, 0
    %p123 = por %p121, %p122
    %s125 = sadd.s32 %s124, 1
    %p128 = scmp.eq.s32.totalorder %s13, 1
    %p129 = scmp.ne.s32.totalorder %s124, %s126
    %p130 = scmp.eq.s32.totalorder %s13, 0
    %p131 = por %p129, %p130
    %p132 = scmp.ne.s32.totalorder %s124, %s126
    %p133 = scmp.eq.s32.totalorder %s18, 1
    %p134 = por %p132, %p133
    %p135 = scmp.ne.s32.totalorder %s126, %s127
    %p136 = scmp.eq.s32.totalorder %s18, 0
    %p137 = por %p135, %p136
    %p138 = scmp.ne.s32.totalorder %s126, %s127
    %p139 = scmp.eq.s32.totalorder %s19, 1
    %p140 = por %p138, %p139
    %p142 = scmp.ne.s32.totalorder %s127, %s141
    %p143 = scmp.eq.s32.totalorder %s19, 0
    %p144 = por %p142, %p143
    %s146 = sadd.s32 %s145, 1
    %p149 = scmp.eq.s32.totalorder %s13, 1
    %p150 = scmp.ne.s32.totalorder %s145, %s147
    %p151 = scmp.eq.s32.totalorder %s13, 0
    %p152 = por %p150, %p151
    %p153 = scmp.ne.s32.totalorder %s145, %s147
    %p154 = scmp.eq.s32.totalorder %s18, 1
    %p155 = por %p153, %p154
    %p156 = scmp.ne.s32.totalorder %s147, %s148
    %p157 = scmp.eq.s32.totalorder %s18, 0
    %p158 = por %p156, %p157
    %p159 = scmp.ne.s32.totalorder %s147, %s148
    %p160 = scmp.eq.s32.totalorder %s19, 1
    %p161 = por %p159, %p160
    %p163 = scmp.ne.s32.totalorder %s148, %s162
    %p164 = scmp.eq.s32.totalorder %s19, 0
    %p165 = por %p163, %p164
    %s167 = sadd.s32 %s166, 1
    %p170 = scmp.eq.s32.totalorder %s13, 1
    %p171 = scmp.ne.s32.totalorder %s166, %s168
    %p172 = scmp.eq.s32.totalorder %s13, 0
    %p173 = por %p171, %p172
    %p174 = scmp.ne.s32.totalorder %s166, %s168
    %p175 = scmp.eq.s32.totalorder %s18, 1
    %p176 = por %p174, %p175
    %p177 = scmp.ne.s32.totalorder %s168, %s169
    %p178 = scmp.eq.s32.totalorder %s18, 0
    %p179 = por %p177, %p178
    %p180 = scmp.ne.s32.totalorder %s168, %s169
    %p181 = scmp.eq.s32.totalorder %s19, 1
    %p182 = por %p180, %p181
    %p184 = scmp.ne.s32.totalorder %s169, %s183
    %p185 = scmp.eq.s32.totalorder %s19, 0
    %p186 = por %p184, %p185
    %s187 = ssub.s32 %s20, %s32
    %s188 = ssub.s32 %s21, %s28
    %s189 = sor.u32 %s187, %s188
    %p190 = scmp.eq.s32.totalorder %s189, 0
    %s192 = sadd.s32 %s191, 1
    %s193 = scalar_select %p190, %s191, %s192
    %p196 = pneg %p190
    %p197 = scmp.eq.s32.totalorder %s13, 1
    %p198 = por %p196, %p197
    %p199 = scmp.ne.s32.totalorder %s191, %s194
    %p200 = scmp.eq.s32.totalorder %s13, 0
    %p201 = por %p199, %p200
    %p202 = scmp.ne.s32.totalorder %s191, %s194
    %p203 = scmp.eq.s32.totalorder %s18, 1
    %p204 = por %p202, %p203
    %p205 = scmp.ne.s32.totalorder %s194, %s195
    %p206 = scmp.eq.s32.totalorder %s18, 0
    %p207 = por %p205, %p206
    %p208 = scmp.ne.s32.totalorder %s194, %s195
    %p209 = scmp.eq.s32.totalorder %s19, 1
    %p210 = por %p208, %p209
    %p212 = scmp.ne.s32.totalorder %s195, %s211
    %p213 = scmp.eq.s32.totalorder %s19, 0
    %p214 = por %p212, %p213
    %p215 = scmp.le.s32.totalorder 1, %s13
    %p216 = scmp.lt.s32.totalorder %s13, 3
    %p217 = pnand %p215, %p216
    %p218 = pneg %p217
    // Predicated region
    $region9: #{final_mlp_forward.1} parent=5 // pred_check
      _
    $region10: #{final_mlp_forward.1} parent=5 // pred_check_branch
      %220 = sbr.rel (%p217) target = $region12
    $region11: #{final_mlp_forward.1} parent=5 // pred_region
      %s221 = ssub.s32 %s13, 1
      // Predicated region
      $region13: #{final_mlp_forward.1} parent=11 // pred_check
        %p222 = pneg %p74
      $region14: #{final_mlp_forward.1} parent=11 // pred_check_branch
        %224 = sbr.rel (%p222) target = $region16
      $region15: #{final_mlp_forward.1} parent=11 // pred_region
        _
      $region16: #{final_mlp_forward.1} parent=11 // pred_fallthru
        _
      // Predicated region
      $region17: #{final_mlp_forward.1} parent=11 // pred_check
        %p225 = pneg %p95
      $region18: #{final_mlp_forward.1} parent=11 // pred_check_branch
        %227 = sbr.rel (%p225) target = $region20
      $region19: #{final_mlp_forward.1} parent=11 // pred_region
        _
      $region20: #{final_mlp_forward.1} parent=11 // pred_fallthru
        _
      // Predicated region
      $region21: #{final_mlp_forward.1} parent=11 // pred_check
        %p228 = pneg %p116
      $region22: #{final_mlp_forward.1} parent=11 // pred_check_branch
        %230 = sbr.rel (%p228) target = $region24
      $region23: #{final_mlp_forward.1} parent=11 // pred_region
        _
      $region24: #{final_mlp_forward.1} parent=11 // pred_fallthru
        _
      // Predicated region
      $region25: #{final_mlp_forward.1} parent=11 // pred_check
        %p231 = pneg %p137
      $region26: #{final_mlp_forward.1} parent=11 // pred_check_branch
        %233 = sbr.rel (%p231) target = $region28
      $region27: #{final_mlp_forward.1} parent=11 // pred_region
        _
      $region28: #{final_mlp_forward.1} parent=11 // pred_fallthru
        _
      // Predicated region
      $region29: #{final_mlp_forward.1} parent=11 // pred_check
        %p234 = pneg %p158
      $region30: #{final_mlp_forward.1} parent=11 // pred_check_branch
        %236 = sbr.rel (%p234) target = $region32
      $region31: #{final_mlp_forward.1} parent=11 // pred_region
        _
      $region32: #{final_mlp_forward.1} parent=11 // pred_fallthru
        _
      // Predicated region
      $region33: #{final_mlp_forward.1} parent=11 // pred_check
        %p237 = pneg %p179
      $region34: #{final_mlp_forward.1} parent=11 // pred_check_branch
        %239 = sbr.rel (%p237) target = $region36
      $region35: #{final_mlp_forward.1} parent=11 // pred_region
        _
      $region36: #{final_mlp_forward.1} parent=11 // pred_fallthru
        _
    $region12: #{final_mlp_forward.1} parent=5 // pred_fallthru
      _
    %p240 = scmp.lt.s32.totalorder %s13, 2
    // Predicated region
    $region37: #{final_mlp_forward.1} parent=5 // pred_check
      %p241 = pneg %p240
    $region38: #{final_mlp_forward.1} parent=5 // pred_check_branch
      %243 = sbr.rel (%p241) target = $region40
    $region39: #{final_mlp_forward.1} parent=5 // pred_region
      // Predicated region
      $region41: #{final_mlp_forward.1} parent=39 // pred_check
        %p244 = pneg %p47
      $region42: #{final_mlp_forward.1} parent=39 // pred_check_branch
        %246 = sbr.rel (%p244) target = $region44
      $region43: #{final_mlp_forward.1} parent=39 // pred_region
        %p247 = scmp.lt.s32.totalorder %s20, 1
        %s248 = scalar_select %p247, %s20, 1
        %p249 = scmp.lt.s32.totalorder %s21, 0
        %s250 = scalar_select %p249, %s21, 0
        %s251 = smul.addr %s248, 4
        %s252 = sadd.s32 %s250, %s251
        %s253 = smul.addr %s252, 8
        %s254 = scalar_lea.vmem %s0, %s253
      $region44: #{final_mlp_forward.1} parent=39 // pred_fallthru
        _
    $region40: #{final_mlp_forward.1} parent=5 // pred_fallthru
      _
    %p255 = scmp.le.s32.totalorder 1, %s13
    %p256 = scmp.lt.s32.totalorder %s13, 3
    %p257 = pnand %p255, %p256
    %p258 = pneg %p257
    // Predicated region
    $region45: #{final_mlp_forward.1} parent=5 // pred_check
      _
    $region46: #{final_mlp_forward.1} parent=5 // pred_check_branch
      %260 = sbr.rel (%p257) target = $region48
    $region47: #{final_mlp_forward.1} parent=5 // pred_region
      %s261 = ssub.s32 %s13, 1
      %p262 = scmp.lt.s32.totalorder %s22, 1
      %s263 = scalar_select %p262, %s22, 1
      %p264 = scmp.lt.s32.totalorder %s23, 0
      %s265 = scalar_select %p264, %s23, 0
      %s266 = smul.addr %s263, 4
      %s267 = sadd.s32 %s265, %s266
      %s268 = smul.addr %s267, 8
      %s269 = scalar_lea.vmem %s0, %s268
      %p270 = pneg %p53
      %p271 = pneg %p50
      %p272 = pneg %p74
      %p273 = pneg %p71
      %p274 = pneg %p95
      %p275 = pneg %p92
      %p276 = pneg %p116
      %p277 = pneg %p113
      %p278 = pneg %p137
      %p279 = pneg %p134
      %p280 = pneg %p158
      %p281 = pneg %p155
      %p282 = pneg %p179
      %p283 = pneg %p176
      %p284 = pneg %p207
      %p285 = pneg %p204
      %p286 = scmp.lt.s32.totalorder %s22, 1
      %s287 = scalar_select %p286, %s22, 1
      %p288 = scmp.lt.s32.totalorder %s23, 0
      %s289 = scalar_select %p288, %s23, 0
      %s290 = sadd.s32 %s289, %s287
      %s291 = smul.addr %s290, 8
      %s292 = scalar_lea.vmem %s7, %s291
      %p293 = scmp.lt.s32.totalorder %s22, 1
      %s294 = scalar_select %p293, %s22, 1
      %p295 = scmp.lt.s32.totalorder %s23, 0
      %s296 = scalar_select %p295, %s23, 0
      %s297 = smul.addr %s294, 4
      %s298 = sadd.s32 %s296, %s297
      %s299 = smul.addr %s298, 8
      %s300 = scalar_lea.vmem %s0, %s299
      %p301 = scmp.lt.s32.totalorder %s22, 1
      %s302 = scalar_select %p301, %s22, 1
      %p303 = scmp.lt.s32.totalorder %s23, 0
      %s304 = scalar_select %p303, %s23, 0
      %s305 = sadd.s32 %s304, %s302
      %s306 = smul.addr %s305, 8
      %s307 = scalar_lea.vmem %s7, %s306
      %v308 = vld [vmem:[%s300] sm:$0xff]
      %v309 = vld [vmem:[%s300 + $0x8] sm:$0xff]
      %v310 = vld [vmem:[%s300 + $0x10] sm:$0xff]
      %v311 = vld [vmem:[%s300 + $0x18] sm:$0xff]
      %v312 = vld [vmem:[%s1] sm:$0xff]
      %v313 = vld [vmem:[%s1 + $0x8] sm:$0xff]
      %v314 = vld [vmem:[%s1 + $0x10] sm:$0xff]
      %v315 = vld [vmem:[%s1 + $0x18] sm:$0xff]
      %v316 = vld [vmem:[%s1 + $0x20] sm:$0xff]
      %v317 = vld [vmem:[%s1 + $0x28] sm:$0xff]
      %v318 = vld [vmem:[%s1 + $0x30] sm:$0xff]
      %v319 = vld [vmem:[%s1 + $0x38] sm:$0xff]
      %v320 = vld [vmem:[%s1 + $0x40] sm:$0xff]
      %v321 = vld [vmem:[%s1 + $0x48] sm:$0xff]
      %v322 = vld [vmem:[%s1 + $0x50] sm:$0xff]
      %v323 = vld [vmem:[%s1 + $0x58] sm:$0xff]
      %v324 = vld [vmem:[%s1 + $0x60] sm:$0xff]
      %v325 = vld [vmem:[%s1 + $0x68] sm:$0xff]
      %v326 = vld [vmem:[%s1 + $0x70] sm:$0xff]
      %v327 = vld [vmem:[%s1 + $0x78] sm:$0xff]
      %v328 = vld [vmem:[%s1 + $0x80] sm:$0xff]
      %v329 = vld [vmem:[%s1 + $0x88] sm:$0xff]
      %v330 = vld [vmem:[%s1 + $0x90] sm:$0xff]
      %v331 = vld [vmem:[%s1 + $0x98] sm:$0xff]
      %v332 = vld [vmem:[%s1 + $0xa0] sm:$0xff]
      %v333 = vld [vmem:[%s1 + $0xa8] sm:$0xff]
      %v334 = vld [vmem:[%s1 + $0xb0] sm:$0xff]
      %v335 = vld [vmem:[%s1 + $0xb8] sm:$0xff]
      %v336 = vld [vmem:[%s1 + $0xc0] sm:$0xff]
      %v337 = vld [vmem:[%s1 + $0xc8] sm:$0xff]
      %v338 = vld [vmem:[%s1 + $0xd0] sm:$0xff]
      %v339 = vld [vmem:[%s1 + $0xd8] sm:$0xff]
      %v340 = vld [vmem:[%s1 + $0xe0] sm:$0xff]
      %v341 = vld [vmem:[%s1 + $0xe8] sm:$0xff]
      %v342 = vld [vmem:[%s1 + $0xf0] sm:$0xff]
      %v343 = vld [vmem:[%s1 + $0xf8] sm:$0xff]
      %v344 = vld [vmem:[%s2] sm:$0xff]
      %v345 = vld [vmem:[%s2 + $0x8] sm:$0xff]
      %v346 = vld [vmem:[%s2 + $0x10] sm:$0xff]
      %v347 = vld [vmem:[%s2 + $0x18] sm:$0xff]
      %v348 = vld [vmem:[%s2 + $0x20] sm:$0xff]
      %v349 = vld [vmem:[%s2 + $0x28] sm:$0xff]
      %v350 = vld [vmem:[%s2 + $0x30] sm:$0xff]
      %v351 = vld [vmem:[%s2 + $0x38] sm:$0xff]
      %v352 = vld [vmem:[%s2 + $0x40] sm:$0xff]
      %v353 = vld [vmem:[%s2 + $0x48] sm:$0xff]
      %v354 = vld [vmem:[%s2 + $0x50] sm:$0xff]
      %v355 = vld [vmem:[%s2 + $0x58] sm:$0xff]
      %v356 = vld [vmem:[%s2 + $0x60] sm:$0xff]
      %v357 = vld [vmem:[%s2 + $0x68] sm:$0xff]
      %v358 = vld [vmem:[%s2 + $0x70] sm:$0xff]
      %v359 = vld [vmem:[%s2 + $0x78] sm:$0xff]
      %v360 = vld [vmem:[%s2 + $0x80] sm:$0xff]
      %v361 = vld [vmem:[%s2 + $0x88] sm:$0xff]
      %v362 = vld [vmem:[%s2 + $0x90] sm:$0xff]
      %v363 = vld [vmem:[%s2 + $0x98] sm:$0xff]
      %v364 = vld [vmem:[%s2 + $0xa0] sm:$0xff]
      %v365 = vld [vmem:[%s2 + $0xa8] sm:$0xff]
      %v366 = vld [vmem:[%s2 + $0xb0] sm:$0xff]
      %v367 = vld [vmem:[%s2 + $0xb8] sm:$0xff]
      %v368 = vld [vmem:[%s2 + $0xc0] sm:$0xff]
      %v369 = vld [vmem:[%s2 + $0xc8] sm:$0xff]
      %v370 = vld [vmem:[%s2 + $0xd0] sm:$0xff]
      %v371 = vld [vmem:[%s2 + $0xd8] sm:$0xff]
      %v372 = vld [vmem:[%s2 + $0xe0] sm:$0xff]
      %v373 = vld [vmem:[%s2 + $0xe8] sm:$0xff]
      %v374 = vld [vmem:[%s2 + $0xf0] sm:$0xff]
      %v375 = vld [vmem:[%s2 + $0xf8] sm:$0xff]
      %377 = vset.pattern.permute.xlu0 0
      %378 = vperm.xlu0 %377, %v344
      %v379 = vpop.permute.xlu0 %378
      %382 = vset.pattern.permute.xlu0 0
      %383 = vperm.xlu0 %382, %v345
      %v384 = vpop.permute.xlu0 %383
      %387 = vset.pattern.permute.xlu0 0
      %388 = vperm.xlu0 %387, %v346
      %v389 = vpop.permute.xlu0 %388
      %392 = vset.pattern.permute.xlu0 0
      %393 = vperm.xlu0 %392, %v347
      %v394 = vpop.permute.xlu0 %393
      %397 = vset.pattern.permute.xlu0 0
      %398 = vperm.xlu0 %397, %v348
      %v399 = vpop.permute.xlu0 %398
      %402 = vset.pattern.permute.xlu0 0
      %403 = vperm.xlu0 %402, %v349
      %v404 = vpop.permute.xlu0 %403
      %407 = vset.pattern.permute.xlu0 0
      %408 = vperm.xlu0 %407, %v350
      %v409 = vpop.permute.xlu0 %408
      %412 = vset.pattern.permute.xlu0 0
      %413 = vperm.xlu0 %412, %v351
      %v414 = vpop.permute.xlu0 %413
      %417 = vset.pattern.permute.xlu0 0
      %418 = vperm.xlu0 %417, %v352
      %v419 = vpop.permute.xlu0 %418
      %422 = vset.pattern.permute.xlu0 0
      %423 = vperm.xlu0 %422, %v353
      %v424 = vpop.permute.xlu0 %423
      %427 = vset.pattern.permute.xlu0 0
      %428 = vperm.xlu0 %427, %v354
      %v429 = vpop.permute.xlu0 %428
      %432 = vset.pattern.permute.xlu0 0
      %433 = vperm.xlu0 %432, %v355
      %v434 = vpop.permute.xlu0 %433
      %437 = vset.pattern.permute.xlu0 0
      %438 = vperm.xlu0 %437, %v356
      %v439 = vpop.permute.xlu0 %438
      %442 = vset.pattern.permute.xlu0 0
      %443 = vperm.xlu0 %442, %v357
      %v444 = vpop.permute.xlu0 %443
      %447 = vset.pattern.permute.xlu0 0
      %448 = vperm.xlu0 %447, %v358
      %v449 = vpop.permute.xlu0 %448
      %452 = vset.pattern.permute.xlu0 0
      %453 = vperm.xlu0 %452, %v359
      %v454 = vpop.permute.xlu0 %453
      %457 = vset.pattern.permute.xlu0 0
      %458 = vperm.xlu0 %457, %v360
      %v459 = vpop.permute.xlu0 %458
      %462 = vset.pattern.permute.xlu0 0
      %463 = vperm.xlu0 %462, %v361
      %v464 = vpop.permute.xlu0 %463
      %467 = vset.pattern.permute.xlu0 0
      %468 = vperm.xlu0 %467, %v362
      %v469 = vpop.permute.xlu0 %468
      %472 = vset.pattern.permute.xlu0 0
      %473 = vperm.xlu0 %472, %v363
      %v474 = vpop.permute.xlu0 %473
      %477 = vset.pattern.permute.xlu0 0
      %478 = vperm.xlu0 %477, %v364
      %v479 = vpop.permute.xlu0 %478
      %482 = vset.pattern.permute.xlu0 0
      %483 = vperm.xlu0 %482, %v365
      %v484 = vpop.permute.xlu0 %483
      %487 = vset.pattern.permute.xlu0 0
      %488 = vperm.xlu0 %487, %v366
      %v489 = vpop.permute.xlu0 %488
      %492 = vset.pattern.permute.xlu0 0
      %493 = vperm.xlu0 %492, %v367
      %v494 = vpop.permute.xlu0 %493
      %497 = vset.pattern.permute.xlu0 0
      %498 = vperm.xlu0 %497, %v368
      %v499 = vpop.permute.xlu0 %498
      %502 = vset.pattern.permute.xlu0 0
      %503 = vperm.xlu0 %502, %v369
      %v504 = vpop.permute.xlu0 %503
      %507 = vset.pattern.permute.xlu0 0
      %508 = vperm.xlu0 %507, %v370
      %v509 = vpop.permute.xlu0 %508
      %512 = vset.pattern.permute.xlu0 0
      %513 = vperm.xlu0 %512, %v371
      %v514 = vpop.permute.xlu0 %513
      %517 = vset.pattern.permute.xlu0 0
      %518 = vperm.xlu0 %517, %v372
      %v519 = vpop.permute.xlu0 %518
      %522 = vset.pattern.permute.xlu0 0
      %523 = vperm.xlu0 %522, %v373
      %v524 = vpop.permute.xlu0 %523
      %527 = vset.pattern.permute.xlu0 0
      %528 = vperm.xlu0 %527, %v374
      %v529 = vpop.permute.xlu0 %528
      %532 = vset.pattern.permute.xlu0 0
      %533 = vperm.xlu0 %532, %v375
      %v534 = vpop.permute.xlu0 %533
      %vm536 = vcmask 261120
      %v538 = vsel %vm536, %v312, 0
      %v541 = vsel %vm536, %v313, 0
      %v544 = vsel %vm536, %v314, 0
      %v547 = vsel %vm536, %v315, 0
      %v550 = vsel %vm536, %v316, 0
      %v553 = vsel %vm536, %v317, 0
      %v556 = vsel %vm536, %v318, 0
      %v559 = vsel %vm536, %v319, 0
      %v562 = vsel %vm536, %v320, 0
      %v565 = vsel %vm536, %v321, 0
      %v568 = vsel %vm536, %v322, 0
      %v571 = vsel %vm536, %v323, 0
      %v574 = vsel %vm536, %v324, 0
      %v577 = vsel %vm536, %v325, 0
      %v580 = vsel %vm536, %v326, 0
      %v583 = vsel %vm536, %v327, 0
      %v586 = vsel %vm536, %v328, 0
      %v589 = vsel %vm536, %v329, 0
      %v592 = vsel %vm536, %v330, 0
      %v595 = vsel %vm536, %v331, 0
      %v598 = vsel %vm536, %v332, 0
      %v601 = vsel %vm536, %v333, 0
      %v604 = vsel %vm536, %v334, 0
      %v607 = vsel %vm536, %v335, 0
      %v610 = vsel %vm536, %v336, 0
      %v613 = vsel %vm536, %v337, 0
      %v616 = vsel %vm536, %v338, 0
      %v619 = vsel %vm536, %v339, 0
      %v622 = vsel %vm536, %v340, 0
      %v625 = vsel %vm536, %v341, 0
      %v628 = vsel %vm536, %v342, 0
      %v631 = vsel %vm536, %v343, 0
      %633 = vmatpush.msra.mxu0 0.0
      %634 = vmatpush.msra.mxu0 0.0
      %635 = vmatpush.msra.mxu0 0.0
      %636 = vmatpush.msra.mxu0 0.0
      %637 = vmatpush.msra.mxu0 0.0
      %638 = vmatpush.msra.mxu0 0.0
      %639 = vmatpush.msra.mxu0 0.0
      %640 = vmatpush.msra.mxu0 0.0
      %641 = vmatpush.msra.mxu0 0.0
      %642 = vmatpush.msra.mxu0 0.0
      %643 = vmatpush.msra.mxu0 0.0
      %644 = vmatpush.msra.mxu0 0.0
      %645 = vmatpush.msra.mxu0 %v311
      %646 = vmatpush.msra.mxu0 %v310
      %647 = vmatpush.msra.mxu0 %v309
      %648 = vmatpush.msra.mxu0 %v308
      %649 = vmatmul.f32.gmra.mxu0 %v538
      %v650 = vpop.f32.mrf.mxu0
      %v651 = vadd.f32 %v379, %v650
      %652 = vmatmul.f32.gmra.mxu0 %v541
      %v653 = vpop.f32.mrf.mxu0
      %v654 = vadd.f32 %v384, %v653
      %655 = vmatmul.f32.gmra.mxu0 %v544
      %v656 = vpop.f32.mrf.mxu0
      %v657 = vadd.f32 %v389, %v656
      %658 = vmatmul.f32.gmra.mxu0 %v547
      %v659 = vpop.f32.mrf.mxu0
      %v660 = vadd.f32 %v394, %v659
      %661 = vmatmul.f32.gmra.mxu0 %v550
      %v662 = vpop.f32.mrf.mxu0
      %v663 = vadd.f32 %v399, %v662
      %664 = vmatmul.f32.gmra.mxu0 %v553
      %v665 = vpop.f32.mrf.mxu0
      %v666 = vadd.f32 %v404, %v665
      %667 = vmatmul.f32.gmra.mxu0 %v556
      %v668 = vpop.f32.mrf.mxu0
      %v669 = vadd.f32 %v409, %v668
      %670 = vmatmul.f32.gmra.mxu0 %v559
      %v671 = vpop.f32.mrf.mxu0
      %v672 = vadd.f32 %v414, %v671
      %673 = vmatmul.f32.gmra.mxu0 %v562
      %v674 = vpop.f32.mrf.mxu0
      %v675 = vadd.f32 %v419, %v674
      %676 = vmatmul.f32.gmra.mxu0 %v565
      %v677 = vpop.f32.mrf.mxu0
      %v678 = vadd.f32 %v424, %v677
      %679 = vmatmul.f32.gmra.mxu0 %v568
      %v680 = vpop.f32.mrf.mxu0
      %v681 = vadd.f32 %v429, %v680
      %682 = vmatmul.f32.gmra.mxu0 %v571
      %v683 = vpop.f32.mrf.mxu0
      %v684 = vadd.f32 %v434, %v683
      %685 = vmatmul.f32.gmra.mxu0 %v574
      %v686 = vpop.f32.mrf.mxu0
      %v687 = vadd.f32 %v439, %v686
      %688 = vmatmul.f32.gmra.mxu0 %v577
      %v689 = vpop.f32.mrf.mxu0
      %v690 = vadd.f32 %v444, %v689
      %691 = vmatmul.f32.gmra.mxu0 %v580
      %v692 = vpop.f32.mrf.mxu0
      %v693 = vadd.f32 %v449, %v692
      %694 = vmatmul.f32.gmra.mxu0 %v583
      %v695 = vpop.f32.mrf.mxu0
      %v696 = vadd.f32 %v454, %v695
      %697 = vmatmul.f32.gmra.mxu0 %v586
      %v698 = vpop.f32.mrf.mxu0
      %v699 = vadd.f32 %v459, %v698
      %700 = vmatmul.f32.gmra.mxu0 %v589
      %v701 = vpop.f32.mrf.mxu0
      %v702 = vadd.f32 %v464, %v701
      %703 = vmatmul.f32.gmra.mxu0 %v592
      %v704 = vpop.f32.mrf.mxu0
      %v705 = vadd.f32 %v469, %v704
      %706 = vmatmul.f32.gmra.mxu0 %v595
      %v707 = vpop.f32.mrf.mxu0
      %v708 = vadd.f32 %v474, %v707
      %709 = vmatmul.f32.gmra.mxu0 %v598
      %v710 = vpop.f32.mrf.mxu0
      %v711 = vadd.f32 %v479, %v710
      %712 = vmatmul.f32.gmra.mxu0 %v601
      %v713 = vpop.f32.mrf.mxu0
      %v714 = vadd.f32 %v484, %v713
      %715 = vmatmul.f32.gmra.mxu0 %v604
      %v716 = vpop.f32.mrf.mxu0
      %v717 = vadd.f32 %v489, %v716
      %718 = vmatmul.f32.gmra.mxu0 %v607
      %v719 = vpop.f32.mrf.mxu0
      %v720 = vadd.f32 %v494, %v719
      %721 = vmatmul.f32.gmra.mxu0 %v610
      %v722 = vpop.f32.mrf.mxu0
      %v723 = vadd.f32 %v499, %v722
      %724 = vmatmul.f32.gmra.mxu0 %v613
      %v725 = vpop.f32.mrf.mxu0
      %v726 = vadd.f32 %v504, %v725
      %727 = vmatmul.f32.gmra.mxu0 %v616
      %v728 = vpop.f32.mrf.mxu0
      %v729 = vadd.f32 %v509, %v728
      %730 = vmatmul.f32.gmra.mxu0 %v619
      %v731 = vpop.f32.mrf.mxu0
      %v732 = vadd.f32 %v514, %v731
      %733 = vmatmul.f32.gmra.mxu0 %v622
      %v734 = vpop.f32.mrf.mxu0
      %v735 = vadd.f32 %v519, %v734
      %736 = vmatmul.f32.gmra.mxu0 %v625
      %v737 = vpop.f32.mrf.mxu0
      %v738 = vadd.f32 %v524, %v737
      %739 = vmatmul.f32.gmra.mxu0 %v628
      %v740 = vpop.f32.mrf.mxu0
      %v741 = vadd.f32 %v529, %v740
      %742 = vmatmul.f32.gmra.mxu0 %v631
      %v743 = vpop.f32.mrf.mxu0
      %v744 = vadd.f32 %v534, %v743
      %745 = vdwg.mxu0
      %v746 = vmax.f32 %v651, 0.0
      %v747 = vmax.f32 %v654, 0.0
      %v748 = vmax.f32 %v657, 0.0
      %v749 = vmax.f32 %v660, 0.0
      %v750 = vmax.f32 %v663, 0.0
      %v751 = vmax.f32 %v666, 0.0
      %v752 = vmax.f32 %v669, 0.0
      %v753 = vmax.f32 %v672, 0.0
      %v754 = vmax.f32 %v675, 0.0
      %v755 = vmax.f32 %v678, 0.0
      %v756 = vmax.f32 %v681, 0.0
      %v757 = vmax.f32 %v684, 0.0
      %v758 = vmax.f32 %v687, 0.0
      %v759 = vmax.f32 %v690, 0.0
      %v760 = vmax.f32 %v693, 0.0
      %v761 = vmax.f32 %v696, 0.0
      %v762 = vmax.f32 %v699, 0.0
      %v763 = vmax.f32 %v702, 0.0
      %v764 = vmax.f32 %v705, 0.0
      %v765 = vmax.f32 %v708, 0.0
      %v766 = vmax.f32 %v711, 0.0
      %v767 = vmax.f32 %v714, 0.0
      %v768 = vmax.f32 %v717, 0.0
      %v769 = vmax.f32 %v720, 0.0
      %v770 = vmax.f32 %v723, 0.0
      %v771 = vmax.f32 %v726, 0.0
      %v772 = vmax.f32 %v729, 0.0
      %v773 = vmax.f32 %v732, 0.0
      %v774 = vmax.f32 %v735, 0.0
      %v775 = vmax.f32 %v738, 0.0
      %v776 = vmax.f32 %v741, 0.0
      %v777 = vmax.f32 %v744, 0.0
      %v778 = vld [vmem:[%s3] sm:$0xff]
      %v779 = vld [vmem:[%s3 + $0x8] sm:$0xff]
      %v780 = vld [vmem:[%s3 + $0x10] sm:$0xff]
      %v781 = vld [vmem:[%s3 + $0x18] sm:$0xff]
      %v782 = vld [vmem:[%s3 + $0x20] sm:$0xff]
      %v783 = vld [vmem:[%s3 + $0x28] sm:$0xff]
      %v784 = vld [vmem:[%s3 + $0x30] sm:$0xff]
      %v785 = vld [vmem:[%s3 + $0x38] sm:$0xff]
      %v786 = vld [vmem:[%s3 + $0x40] sm:$0xff]
      %v787 = vld [vmem:[%s3 + $0x48] sm:$0xff]
      %v788 = vld [vmem:[%s3 + $0x50] sm:$0xff]
      %v789 = vld [vmem:[%s3 + $0x58] sm:$0xff]
      %v790 = vld [vmem:[%s3 + $0x60] sm:$0xff]
      %v791 = vld [vmem:[%s3 + $0x68] sm:$0xff]
      %v792 = vld [vmem:[%s3 + $0x70] sm:$0xff]
      %v793 = vld [vmem:[%s3 + $0x78] sm:$0xff]
      %v794 = vld [vmem:[%s4] sm:$0xff]
      %v795 = vld [vmem:[%s4 + $0x8] sm:$0xff]
      %v796 = vld [vmem:[%s4 + $0x10] sm:$0xff]
      %v797 = vld [vmem:[%s4 + $0x18] sm:$0xff]
      %v798 = vld [vmem:[%s4 + $0x20] sm:$0xff]
      %v799 = vld [vmem:[%s4 + $0x28] sm:$0xff]
      %v800 = vld [vmem:[%s4 + $0x30] sm:$0xff]
      %v801 = vld [vmem:[%s4 + $0x38] sm:$0xff]
      %803 = vset.pattern.permute.xlu0 0
      %804 = vperm.xlu0 %803, %v794
      %v805 = vpop.permute.xlu0 %804
      %808 = vset.pattern.permute.xlu0 0
      %809 = vperm.xlu0 %808, %v795
      %v810 = vpop.permute.xlu0 %809
      %813 = vset.pattern.permute.xlu0 0
      %814 = vperm.xlu0 %813, %v796
      %v815 = vpop.permute.xlu0 %814
      %818 = vset.pattern.permute.xlu0 0
      %819 = vperm.xlu0 %818, %v797
      %v820 = vpop.permute.xlu0 %819
      %823 = vset.pattern.permute.xlu0 0
      %824 = vperm.xlu0 %823, %v798
      %v825 = vpop.permute.xlu0 %824
      %828 = vset.pattern.permute.xlu0 0
      %829 = vperm.xlu0 %828, %v799
      %v830 = vpop.permute.xlu0 %829
      %833 = vset.pattern.permute.xlu0 0
      %834 = vperm.xlu0 %833, %v800
      %v835 = vpop.permute.xlu0 %834
      %838 = vset.pattern.permute.xlu0 0
      %839 = vperm.xlu0 %838, %v801
      %v840 = vpop.permute.xlu0 %839
      %842 = vmatpush.msra.mxu0 %v761
      %843 = vmatpush.msra.mxu0 %v760
      %844 = vmatpush.msra.mxu0 %v759
      %845 = vmatpush.msra.mxu0 %v758
      %846 = vmatpush.msra.mxu0 %v757
      %847 = vmatpush.msra.mxu0 %v756
      %848 = vmatpush.msra.mxu0 %v755
      %849 = vmatpush.msra.mxu0 %v754
      %850 = vmatpush.msra.mxu0 %v753
      %851 = vmatpush.msra.mxu0 %v752
      %852 = vmatpush.msra.mxu0 %v751
      %853 = vmatpush.msra.mxu0 %v750
      %854 = vmatpush.msra.mxu0 %v749
      %855 = vmatpush.msra.mxu0 %v748
      %856 = vmatpush.msra.mxu0 %v747
      %857 = vmatpush.msra.mxu0 %v746
      %858 = vmatmul.f32.gmra.mxu0 %v778
      %v859 = vpop.f32.mrf.mxu0
      %v860 = vadd.f32 %v805, %v859
      %861 = vmatmul.f32.gmra.mxu0 %v780
      %v862 = vpop.f32.mrf.mxu0
      %v863 = vadd.f32 %v810, %v862
      %864 = vmatmul.f32.gmra.mxu0 %v782
      %v865 = vpop.f32.mrf.mxu0
      %v866 = vadd.f32 %v815, %v865
      %867 = vmatmul.f32.gmra.mxu0 %v784
      %v868 = vpop.f32.mrf.mxu0
      %v869 = vadd.f32 %v820, %v868
      %870 = vmatmul.f32.gmra.mxu0 %v786
      %v871 = vpop.f32.mrf.mxu0
      %v872 = vadd.f32 %v825, %v871
      %873 = vmatmul.f32.gmra.mxu0 %v788
      %v874 = vpop.f32.mrf.mxu0
      %v875 = vadd.f32 %v830, %v874
      %876 = vmatmul.f32.gmra.mxu0 %v790
      %v877 = vpop.f32.mrf.mxu0
      %v878 = vadd.f32 %v835, %v877
      %879 = vmatmul.f32.gmra.mxu0 %v792
      %v880 = vpop.f32.mrf.mxu0
      %v881 = vadd.f32 %v840, %v880
      %882 = vdwg.mxu0
      %883 = vmatpush.msra.mxu0 %v777
      %884 = vmatpush.msra.mxu0 %v776
      %885 = vmatpush.msra.mxu0 %v775
      %886 = vmatpush.msra.mxu0 %v774
      %887 = vmatpush.msra.mxu0 %v773
      %888 = vmatpush.msra.mxu0 %v772
      %889 = vmatpush.msra.mxu0 %v771
      %890 = vmatpush.msra.mxu0 %v770
      %891 = vmatpush.msra.mxu0 %v769
      %892 = vmatpush.msra.mxu0 %v768
      %893 = vmatpush.msra.mxu0 %v767
      %894 = vmatpush.msra.mxu0 %v766
      %895 = vmatpush.msra.mxu0 %v765
      %896 = vmatpush.msra.mxu0 %v764
      %897 = vmatpush.msra.mxu0 %v763
      %898 = vmatpush.msra.mxu0 %v762
      %899 = vmatmul.f32.gmra.mxu0 %v779
      %v900 = vpop.f32.mrf.mxu0
      %v901 = vadd.f32 %v860, %v900
      %902 = vmatmul.f32.gmra.mxu0 %v781
      %v903 = vpop.f32.mrf.mxu0
      %v904 = vadd.f32 %v863, %v903
      %905 = vmatmul.f32.gmra.mxu0 %v783
      %v906 = vpop.f32.mrf.mxu0
      %v907 = vadd.f32 %v866, %v906
      %908 = vmatmul.f32.gmra.mxu0 %v785
      %v909 = vpop.f32.mrf.mxu0
      %v910 = vadd.f32 %v869, %v909
      %911 = vmatmul.f32.gmra.mxu0 %v787
      %v912 = vpop.f32.mrf.mxu0
      %v913 = vadd.f32 %v872, %v912
      %914 = vmatmul.f32.gmra.mxu0 %v789
      %v915 = vpop.f32.mrf.mxu0
      %v916 = vadd.f32 %v875, %v915
      %917 = vmatmul.f32.gmra.mxu0 %v791
      %v918 = vpop.f32.mrf.mxu0
      %v919 = vadd.f32 %v878, %v918
      %920 = vmatmul.f32.gmra.mxu0 %v793
      %v921 = vpop.f32.mrf.mxu0
      %v922 = vadd.f32 %v881, %v921
      %923 = vdwg.mxu0
      %v924 = vmax.f32 %v901, 0.0
      %v925 = vmax.f32 %v904, 0.0
      %v926 = vmax.f32 %v907, 0.0
      %v927 = vmax.f32 %v910, 0.0
      %v928 = vmax.f32 %v913, 0.0
      %v929 = vmax.f32 %v916, 0.0
      %v930 = vmax.f32 %v919, 0.0
      %v931 = vmax.f32 %v922, 0.0
      %v932 = vld [vmem:[%s5] sm:$0xff]
      %v933 = vld [vmem:[%s6] sm:$0xff]
      %935 = vset.pattern.permute.xlu0 0
      %936 = vperm.xlu0 %935, %v933
      %v937 = vpop.permute.xlu0 %936
      %vm939 = vcmask 523264
      %v941 = vsel %vm939, %v932, 0
      %943 = vmatpush.msra.mxu0 0.0
      %944 = vmatpush.msra.mxu0 0.0
      %945 = vmatpush.msra.mxu0 0.0
      %946 = vmatpush.msra.mxu0 0.0
      %947 = vmatpush.msra.mxu0 0.0
      %948 = vmatpush.msra.mxu0 0.0
      %949 = vmatpush.msra.mxu0 0.0
      %950 = vmatpush.msra.mxu0 0.0
      %951 = vmatpush.msra.mxu0 %v931
      %952 = vmatpush.msra.mxu0 %v930
      %953 = vmatpush.msra.mxu0 %v929
      %954 = vmatpush.msra.mxu0 %v928
      %955 = vmatpush.msra.mxu0 %v927
      %956 = vmatpush.msra.mxu0 %v926
      %957 = vmatpush.msra.mxu0 %v925
      %958 = vmatpush.msra.mxu0 %v924
      %959 = vmatmul.f32.gmra.mxu0 %v941
      %v960 = vpop.f32.mrf.mxu0
      %v961 = vadd.f32 %v937, %v960
      %962 = vdwg.mxu0
      %963 = vst [vmem:[%s307] sm:$0xff] %v961
      %p964 = scmp.lt.s32.totalorder %s22, 1
      %s965 = scalar_select %p964, %s22, 1
      %p966 = scmp.lt.s32.totalorder %s23, 0
      %s967 = scalar_select %p966, %s23, 0
      %s968 = sadd.s32 %s967, %s965
      %s969 = smul.addr %s968, 8
      %s970 = scalar_lea.vmem %s7, %s969
      // Predicated region
      $region49: #{final_mlp_forward.1} parent=47 // pred_check
        %p971 = pneg %p204
      $region50: #{final_mlp_forward.1} parent=47 // pred_check_branch
        %973 = sbr.rel (%p971) target = $region52
      $region51: #{final_mlp_forward.1} parent=47 // pred_region
        _
      $region52: #{final_mlp_forward.1} parent=47 // pred_fallthru
        _
    $region48: #{final_mlp_forward.1} parent=5 // pred_fallthru
      _
    %p974 = scmp.le.s32.totalorder 2, %s13
    // Predicated region
    $region53: #{final_mlp_forward.1} parent=5 // pred_check
      %p975 = pneg %p974
    $region54: #{final_mlp_forward.1} parent=5 // pred_check_branch
      %977 = sbr.rel (%p975) target = $region56
    $region55: #{final_mlp_forward.1} parent=5 // pred_region
      %s978 = ssub.s32 %s13, 2
      // Predicated region
      $region57: #{final_mlp_forward.1} parent=55 // pred_check
        %p979 = pneg %p210
      $region58: #{final_mlp_forward.1} parent=55 // pred_check_branch
        %981 = sbr.rel (%p979) target = $region60
      $region59: #{final_mlp_forward.1} parent=55 // pred_region
        %p982 = scmp.lt.s32.totalorder %s24, 1
        %s983 = scalar_select %p982, %s24, 1
        %p984 = scmp.lt.s32.totalorder %s25, 0
        %s985 = scalar_select %p984, %s25, 0
        %s986 = sadd.s32 %s985, %s983
        %s987 = smul.addr %s986, 8
        %s988 = scalar_lea.vmem %s7, %s987
      $region60: #{final_mlp_forward.1} parent=55 // pred_fallthru
        _
    $region56: #{final_mlp_forward.1} parent=5 // pred_fallthru
      _
  $region6: #{final_mlp_forward.1} parent=0 // loop_footer
    %s17 = sadd.s32 1, %s13
  $region7: #{final_mlp_forward.1} parent=0 // loop_footer_branch
    %12 = sbr.rel target = $region3
  $region8: #{final_mlp_forward.1} parent=0 // loop_exit
    _

</llo_original>
